<compile_context>
chip_gen: v5e
topology: v5e:2x2
jax: 0.10.0
libtpu: 0.0.40
codegen_flags: <defaults>
</compile_context>

<pallas_src>
import functools

import jax
import jax.numpy as jnp
from jax.experimental import pallas as pl
from jax.experimental.pallas import tpu as pltpu

LANE = 128
SUBLANE = 8
NEG_INF = -1e30  # bias for padded logit lanes -> exp() == 0 under softmax


def _round_up(n, m):
    return (n + m - 1) // m * m


def _choose_tiling(batch, cap):
    """Pick (tile_b, num_steps) with minimal padding and >=2 steps when possible."""
    b8 = _round_up(batch, SUBLANE)
    steps = max(1, -(-b8 // cap))
    # Use at least 2 grid steps when the batch allows, so the "parallel" grid
    # axis can shard across v7x's two TensorCores (no cost on v5e/v6e).
    if b8 >= 2 * SUBLANE:
        steps = max(steps, 2)
    if steps > 1:
        steps = _round_up(steps, 2)          # even step count -> balanced split
    tile_b = _round_up(-(-b8 // steps), SUBLANE)
    return tile_b, steps


def _tonynn_kernel(x_ref, w_ref, b_ref, o_ref, *, in_size):
    # x_ref: (tile_b, in_size) f32   w_ref: (3, P, P) bf16   b_ref: (3, 1, P) f32
    x = x_ref[...].astype(jnp.bfloat16)

    # fc1 + ReLU (bf16 MXU operands, f32 accumulation / epilogue)
    h = jnp.dot(x, w_ref[0, :in_size, :],
                preferred_element_type=jnp.float32) + b_ref[0]
    h = jnp.maximum(h, 0.0)

    # dropout (eval mode) == identity

    # fc2 + ReLU
    h = jnp.dot(h.astype(jnp.bfloat16), w_ref[1],
                preferred_element_type=jnp.float32) + b_ref[1]
    h = jnp.maximum(h, 0.0)

    # fc3 — padded logit lanes carry the -1e30 bias baked into b_ref[2]
    logits = jnp.dot(h.astype(jnp.bfloat16), w_ref[2],
                     preferred_element_type=jnp.float32) + b_ref[2]

    # softmax over the feature axis (f32); reciprocal goes to the EUP slot.
    m = jnp.max(logits, axis=-1, keepdims=True)
    e = jnp.exp(logits - m)
    inv = pl.reciprocal(jnp.sum(e, axis=-1, keepdims=True), approx=True)
    o_ref[...] = (e * inv).astype(o_ref.dtype)


def tonynn_forward(x, params, *, tile_b_cap=2048, out_dtype=jnp.bfloat16):
    """x: (B, input_size) float. params: dict from init_params (padded/stacked)."""
    w_stack = params["w"]            # (3, P, P) bf16
    b_stack = params["b"]            # (3, 1, P) f32
    out_size = params["out_size"]
    P = w_stack.shape[-1]
    B, in_size = x.shape

    tile_b, steps = _choose_tiling(B, tile_b_cap)
    b_pad = tile_b * steps

    x = x.astype(jnp.float32)
    if b_pad != B:
        # Minimal batch rounding only (at most steps*8 - 1 extra zero rows).
        x = jnp.pad(x, ((0, b_pad - B), (0, 0)))

    out_bytes = b_pad * P * jnp.dtype(out_dtype).itemsize
    cost = pl.CostEstimate(
        flops=2 * b_pad * P * (in_size + 2 * P),
        transcendentals=b_pad * P,
        bytes_accessed=(b_pad * in_size * 4 + w_stack.size * 2
                        + b_stack.size * 4 + out_bytes),
    )

    # Weight/bias index_maps are constant across the grid, so Pallas keeps
    # them VMEM-resident and never re-issues their DMA after the first fetch.
    out_pad = pl.pallas_call(
        functools.partial(_tonynn_kernel, in_size=in_size),
        out_shape=jax.ShapeDtypeStruct((b_pad, P), out_dtype),
        grid_spec=pltpu.PrefetchScalarGridSpec(
            num_scalar_prefetch=0,
            grid=(steps,),
            in_specs=[
                pl.BlockSpec((tile_b, in_size), lambda i: (i, 0)),
                pl.BlockSpec(w_stack.shape, lambda i: (0, 0, 0)),
                pl.BlockSpec(b_stack.shape, lambda i: (0, 0, 0)),
            ],
            out_specs=pl.BlockSpec((tile_b, P), lambda i: (i, 0)),
        ),
        compiler_params=pltpu.CompilerParams(
            dimension_semantics=("parallel",),
            vmem_limit_bytes=32 * 1024 * 1024,
        ),
        cost_estimate=cost,
    )(x, w_stack, b_stack)

    # Strip batch/feature padding. Padded logit lanes have ~0 probability, so
    # the real columns already sum to ~1.
    return out_pad[:B, :out_size]


def init_params(key, input_size, hidden_size, output_size):
    """PyTorch-style uniform init; weights padded to (P, P), stacked, bf16."""
    P = _round_up(max(input_size, hidden_size, output_size), LANE)

    def linear(k, fan_in, fan_out):
        kw, kb = jax.random.split(k)
        bound = 1.0 / jnp.sqrt(fan_in)
        # PyTorch stores W as (out, in); generate that way then transpose.
        w = jax.random.uniform(kw, (fan_out, fan_in), jnp.float32, -bound, bound).T
        b = jax.random.uniform(kb, (fan_out,), jnp.float32, -bound, bound)
        return w, b

    k1, k2, k3 = jax.random.split(key, 3)
    w1, b1 = linear(k1, input_size, hidden_size)
    w2, b2 = linear(k2, hidden_size, hidden_size)
    w3, b3 = linear(k3, hidden_size, output_size)

    def pad_w(w):
        return jnp.zeros((P, P), jnp.float32).at[:w.shape[0], :w.shape[1]].set(w)

    w_stack = jnp.stack([pad_w(w1), pad_w(w2), pad_w(w3)]).astype(jnp.bfloat16)

    b1p = jnp.zeros((P,), jnp.float32).at[:hidden_size].set(b1)
    b2p = jnp.zeros((P,), jnp.float32).at[:hidden_size].set(b2)
    b3p = jnp.full((P,), NEG_INF, jnp.float32).at[:output_size].set(b3)
    b_stack = jnp.stack([b1p, b2p, b3p]).reshape(3, 1, P)

    return {"w": w_stack, "b": b_stack, "out_size": output_size, "P": P}


def reference_forward(x, params):
    """Pure-JAX reference using the same bf16-rounded operands, f32 math."""
    w = params["w"].astype(jnp.float32)
    b = params["b"].astype(jnp.float32)
    in_size = x.shape[1]
    xb = x.astype(jnp.bfloat16).astype(jnp.float32)
    h = jnp.maximum(xb @ w[0, :in_size, :] + b[0], 0.0)
    h = jnp.maximum(h.astype(jnp.bfloat16).astype(jnp.float32) @ w[1] + b[1], 0.0)
    logits = h.astype(jnp.bfloat16).astype(jnp.float32) @ w[2] + b[2]
    probs = jax.nn.softmax(logits, axis=1)
    return probs[:, :params["out_size"]]


if __name__ == "__main__":
    batch, input_size, hidden_size, output_size = 8, 32, 32, 16

    key = jax.random.PRNGKey(0)
    kx, kx2, kp = jax.random.split(key, 3)
    params = init_params(kp, input_size, hidden_size, output_size)

    # Small demo shape (grid=(1,)): purely launch/DMA-latency bound by design.
    x = jax.random.normal(kx, (batch, input_size), jnp.float32)
    out = jax.block_until_ready(tonynn_forward(x, params))
    ref = reference_forward(x, params)
    assert out.shape == (batch, output_size)
    # bf16 operands/output + approx reciprocal -> loose tolerance.
    assert jnp.allclose(out.astype(jnp.float32), ref, atol=2e-2, rtol=2e-2), \
        "mismatch vs reference (B=8)"
    assert jnp.allclose(jnp.sum(out.astype(jnp.float32), axis=1), 1.0, atol=2e-2), \
        "softmax rows must sum to ~1"

    # Exercise the multi-step grid (v7x two-TC split) and batch-remainder path.
    x2 = jax.random.normal(kx2, (40, input_size), jnp.float32)
    out2 = jax.block_until_ready(tonynn_forward(x2, params))
    ref2 = reference_forward(x2, params)
    assert out2.shape == (40, output_size)
    assert jnp.allclose(out2.astype(jnp.float32), ref2, atol=2e-2, rtol=2e-2), \
        "mismatch vs reference (B=40, grid=2)"

    print("KERNEL_OK")
</pallas_src>

<mosaic_0001>
module attributes {stable_mosaic.version = 11 : i64} {
  func.func @_tonynn_kernel(%arg0: i32, %arg1: memref<8x32xf32, #tpu.memory_space<vmem>>, %arg2: memref<3x128x128xbf16, #tpu.memory_space<vmem>>, %arg3: memref<3x1x128xf32, #tpu.memory_space<vmem>>, %arg4: memref<8x128xbf16, #tpu.memory_space<vmem>>) attributes {dimension_semantics = [#tpu.dimension_semantics<parallel>], iteration_bounds = array<i64: 1>, scalar_prefetch = 0 : i64, scratch_operands = 0 : i64, tpu.core_type = #tpu.core_type<tc>, window_params = [{transform_indices = @transform_0, window_bounds = array<i64: 8, 32>}, {pipeline_mode = #tpu.pipeline_mode<synchronous>, transform_indices = @transform_1, window_bounds = array<i64: 3, 128, 128>}, {pipeline_mode = #tpu.pipeline_mode<synchronous>, transform_indices = @transform_2, window_bounds = array<i64: 3, 1, 128>}, {transform_indices = @transform_3, window_bounds = array<i64: 8, 128>}]} {
    %c0 = arith.constant 0 : index
    %c0_0 = arith.constant 0 : index
    %0 = vector.load %arg1[%c0, %c0_0] : memref<8x32xf32, #tpu.memory_space<vmem>>, vector<8x32xf32>
    %1 = arith.truncf %0 : vector<8x32xf32> to vector<8x32xbf16>
    %c0_1 = arith.constant 0 : index
    %c0_2 = arith.constant 0 : index
    %c0_3 = arith.constant 0 : index
    %2 = vector.load %arg2[%c0_1, %c0_2, %c0_3] : memref<3x128x128xbf16, #tpu.memory_space<vmem>>, vector<1x32x128xbf16>
    %3 = vector.shape_cast %2 : vector<1x32x128xbf16> to vector<32x128xbf16>
    %cst = arith.constant dense<0.000000e+00> : vector<8x128xf32>
    %4 = tpu.matmul %1, %3, %cst {dimension_numbers = #tpu.dot_dimension_numbers<[1], [0], [0], [1], [0, 0, 1, 1], [], []>} : vector<8x32xbf16>, vector<32x128xbf16>, vector<8x128xf32> -> vector<8x128xf32>
    %c0_4 = arith.constant 0 : index
    %c0_5 = arith.constant 0 : index
    %c0_6 = arith.constant 0 : index
    %5 = vector.load %arg3[%c0_4, %c0_5, %c0_6] : memref<3x1x128xf32, #tpu.memory_space<vmem>>, vector<1x1x128xf32>
    %6 = vector.shape_cast %5 : vector<1x1x128xf32> to vector<1x128xf32>
    %7 = vector.broadcast %6 : vector<1x128xf32> to vector<8x128xf32>
    %8 = arith.addf %4, %7 : vector<8x128xf32>
    %cst_7 = arith.constant 0.000000e+00 : f32
    %9 = vector.broadcast %cst_7 : f32 to vector<8x128xf32>
    %10 = arith.maximumf %8, %9 : vector<8x128xf32>
    %11 = arith.truncf %10 : vector<8x128xf32> to vector<8x128xbf16>
    %c1 = arith.constant 1 : index
    %c0_8 = arith.constant 0 : index
    %c0_9 = arith.constant 0 : index
    %12 = vector.load %arg2[%c1, %c0_8, %c0_9] : memref<3x128x128xbf16, #tpu.memory_space<vmem>>, vector<1x128x128xbf16>
    %13 = vector.shape_cast %12 : vector<1x128x128xbf16> to vector<128x128xbf16>
    %cst_10 = arith.constant dense<0.000000e+00> : vector<8x128xf32>
    %14 = tpu.matmul %11, %13, %cst_10 {dimension_numbers = #tpu.dot_dimension_numbers<[1], [0], [0], [1], [0, 0, 1, 1], [], []>} : vector<8x128xbf16>, vector<128x128xbf16>, vector<8x128xf32> -> vector<8x128xf32>
    %c1_11 = arith.constant 1 : index
    %c0_12 = arith.constant 0 : index
    %c0_13 = arith.constant 0 : index
    %15 = vector.load %arg3[%c1_11, %c0_12, %c0_13] : memref<3x1x128xf32, #tpu.memory_space<vmem>>, vector<1x1x128xf32>
    %16 = vector.shape_cast %15 : vector<1x1x128xf32> to vector<1x128xf32>
    %17 = vector.broadcast %16 : vector<1x128xf32> to vector<8x128xf32>
    %18 = arith.addf %14, %17 : vector<8x128xf32>
    %cst_14 = arith.constant 0.000000e+00 : f32
    %19 = vector.broadcast %cst_14 : f32 to vector<8x128xf32>
    %20 = arith.maximumf %18, %19 : vector<8x128xf32>
    %21 = arith.truncf %20 : vector<8x128xf32> to vector<8x128xbf16>
    %c2 = arith.constant 2 : index
    %c0_15 = arith.constant 0 : index
    %c0_16 = arith.constant 0 : index
    %22 = vector.load %arg2[%c2, %c0_15, %c0_16] : memref<3x128x128xbf16, #tpu.memory_space<vmem>>, vector<1x128x128xbf16>
    %23 = vector.shape_cast %22 : vector<1x128x128xbf16> to vector<128x128xbf16>
    %cst_17 = arith.constant dense<0.000000e+00> : vector<8x128xf32>
    %24 = tpu.matmul %21, %23, %cst_17 {dimension_numbers = #tpu.dot_dimension_numbers<[1], [0], [0], [1], [0, 0, 1, 1], [], []>} : vector<8x128xbf16>, vector<128x128xbf16>, vector<8x128xf32> -> vector<8x128xf32>
    %c2_18 = arith.constant 2 : index
    %c0_19 = arith.constant 0 : index
    %c0_20 = arith.constant 0 : index
    %25 = vector.load %arg3[%c2_18, %c0_19, %c0_20] : memref<3x1x128xf32, #tpu.memory_space<vmem>>, vector<1x1x128xf32>
    %26 = vector.shape_cast %25 : vector<1x1x128xf32> to vector<1x128xf32>
    %27 = vector.broadcast %26 : vector<1x128xf32> to vector<8x128xf32>
    %28 = arith.addf %24, %27 : vector<8x128xf32>
    %cst_21 = arith.constant dense<0xFF800000> : vector<8xf32>
    %29 = vector.multi_reduction <maximumf>, %28, %cst_21 [1] : vector<8x128xf32> to vector<8xf32>
    %30 = vector.shape_cast %29 : vector<8xf32> to vector<8x1xf32>
    %31 = vector.broadcast %30 : vector<8x1xf32> to vector<8x128xf32>
    %32 = arith.subf %28, %31 : vector<8x128xf32>
    %33 = math.exp %32 : vector<8x128xf32>
    %cst_22 = arith.constant dense<0.000000e+00> : vector<8xf32>
    %34 = vector.multi_reduction <add>, %33, %cst_22 [1] : vector<8x128xf32> to vector<8xf32>
    %35 = vector.shape_cast %34 : vector<8xf32> to vector<8x1xf32>
    %36 = tpu.reciprocal %35 {approx = true} : vector<8x1xf32> -> vector<8x1xf32>
    %37 = vector.broadcast %36 : vector<8x1xf32> to vector<8x128xf32>
    %38 = arith.mulf %33, %37 : vector<8x128xf32>
    %39 = arith.truncf %38 : vector<8x128xf32> to vector<8x128xbf16>
    %c0_23 = arith.constant 0 : index
    %c0_24 = arith.constant 0 : index
    %40 = vector.load %arg4[%c0_23, %c0_24] : memref<8x128xbf16, #tpu.memory_space<vmem>>, vector<8x128xbf16>
    tpu.vector_store %arg4[%c0_23, %c0_24], %39 {strides = array<i32>} : memref<8x128xbf16, #tpu.memory_space<vmem>>, vector<8x128xbf16>,
    return
  }
  func.func @transform_0(%arg0: i32) -> (i32, i32) {
    %c0_i32 = arith.constant 0 : i32
    %c0_i32_0 = arith.constant 0 : i32
    return %arg0, %c0_i32 : i32, i32
  }
  func.func @transform_1(%arg0: i32) -> (i32, i32, i32) {
    %c0_i32 = arith.constant 0 : i32
    %c0_i32_0 = arith.constant 0 : i32
    %c0_i32_1 = arith.constant 0 : i32
    %c0_i32_2 = arith.constant 0 : i32
    return %c0_i32, %c0_i32_0, %c0_i32_1 : i32, i32, i32
  }
  func.func @transform_2(%arg0: i32) -> (i32, i32, i32) {
    %c0_i32 = arith.constant 0 : i32
    %c0_i32_0 = arith.constant 0 : i32
    %c0_i32_1 = arith.constant 0 : i32
    %c0_i32_2 = arith.constant 0 : i32
    return %c0_i32, %c0_i32_0, %c0_i32_1 : i32, i32, i32
  }
  func.func @transform_3(%arg0: i32) -> (i32, i32) {
    %c0_i32 = arith.constant 0 : i32
    %c0_i32_0 = arith.constant 0 : i32
    return %arg0, %c0_i32 : i32, i32
  }
}

</mosaic_0001>

<llo_original>
// kernel: tpu_custom_call.1
$region0: #{tpu_custom_call.1}
  #allocation0 [shape = 'u32[]', space=smem, size = 0x4, offset = 0x4, fixed_abs, tag = 'smem constant byte address 0x4 - core index']
  #allocation1 [shape = 'u32[72,128]{1,0:T(1,128)}', space=vmem, size = 0x9000, scoped, tag = 'internal scratch']
  %s0 = inlined_call_operand.hbm [shape: f32[8,32], index: 0, kind: input, shape index: {}]
  %s1 = inlined_call_operand.hbm [shape: bf16[3,128,128], index: 1, kind: input, shape index: {}]
  %s2 = inlined_call_operand.hbm [shape: f32[3,1,128], index: 2, kind: input, shape index: {}]
  %s3 = inlined_call_operand.hbm [shape: bf16[8,128], index: 3, kind: output, shape index: {}]
  %s4 = sld [smem:[#allocation0]]
  $region34: #{tpu_custom_call.1} parent=0
    _
  %s6 = ssub.s32 1, %s4
  %s7 = scalar_select 0, %s6, %s4
  $region1: #{tpu_custom_call.1} parent=0
    #allocation2 [shape = 'u8[4096]{0}', space=vmem, size = 0x1000, scoped, tag = 'input window, operand 0, single buffered']
    #allocation3 [shape = 's32[1]{0}', space=sflag, size = 0x4, scoped, tag = 'scoped memory for tpu_custom_call.1']
    #allocation4 [shape = 's32[1]{0}', space=sflag, size = 0x4, scoped, tag = 'scoped memory for tpu_custom_call.1']
    #allocation5 [shape = 'u8[98304]{0}', space=vmem, size = 0x18000, scoped, tag = 'input window, operand 1, single buffered']
    #allocation6 [shape = 's32[1]{0}', space=sflag, size = 0x4, scoped, tag = 'scoped memory for tpu_custom_call.1']
    #allocation7 [shape = 'u8[1536]{0}', space=vmem, size = 0x800, scoped, tag = 'input window, operand 2, single buffered']
    #allocation8 [shape = 'u8[2048]{0}', space=vmem, size = 0x800, scoped, tag = 'output window, operand 0, single buffered']
    %8 = vsyncpa [#allocation3], 0
    %9 = vsyncpa [#allocation6], 0
    %10 = vsyncpa [#allocation4], 0
    // Predicated region
    $region2: #{tpu_custom_call.1} parent=1 // pred_check
      _
    $region3: #{tpu_custom_call.1} parent=1 // pred_check_branch
      %12 = sbr.rel (0) target = $region5
    $region4: #{tpu_custom_call.1} parent=1 // pred_region
      %14 = vsyncadd [#allocation3], 0
      %s16 = sshll.u32 %s0, 4
      %s17 = int_to_ptr.hbm [resolvable:$true] %s16
      %s18 = sshll.u32 [#allocation2], 4
      %s19 = int_to_ptr.vmem [resolvable:$true] %s18
      %21 = dma.hbm_to_vmem [thread:$0]  %s17, 128, %s19, [#allocation3]
    $region5: #{tpu_custom_call.1} parent=1 // pred_fallthru
      _
    // Predicated region
    $region6: #{tpu_custom_call.1} parent=1 // pred_check
      _
    $region7: #{tpu_custom_call.1} parent=1 // pred_check_branch
      %23 = sbr.rel (0) target = $region9
    $region8: #{tpu_custom_call.1} parent=1 // pred_region
      %25 = vsyncadd [#allocation6], 0
      %s26 = sshll.u32 %s1, 4
      %s27 = int_to_ptr.hbm [resolvable:$true] %s26
      %s28 = sshll.u32 [#allocation5], 4
      %s29 = int_to_ptr.vmem [resolvable:$true] %s28
      %34 = dma.hbm_to_vmem [thread:$0]  %s27, 3072, %s29, [#allocation6], 64, 64, 4
    $region9: #{tpu_custom_call.1} parent=1 // pred_fallthru
      _
    // Predicated region
    $region10: #{tpu_custom_call.1} parent=1 // pred_check
      _
    $region11: #{tpu_custom_call.1} parent=1 // pred_check_branch
      %36 = sbr.rel (0) target = $region13
    $region12: #{tpu_custom_call.1} parent=1 // pred_region
      %38 = vsyncadd [#allocation6], 0
      %s39 = sshll.u32 %s2, 4
      %s40 = int_to_ptr.hbm [resolvable:$true] %s39
      %s41 = sshll.u32 [#allocation7], 4
      %s42 = int_to_ptr.vmem [resolvable:$true] %s41
      %47 = dma.hbm_to_vmem [thread:$0]  %s40, 48, %s42, [#allocation6], 16, 16, 1
    $region13: #{tpu_custom_call.1} parent=1 // pred_fallthru
      _
    // Predicated region
    $region14: #{tpu_custom_call.1} parent=1 // pred_check
      _
    $region15: #{tpu_custom_call.1} parent=1 // pred_check_branch
      %49 = sbr.rel (0) target = $region17
    $region16: #{tpu_custom_call.1} parent=1 // pred_region
      %51 = dma.done [#allocation3], 128
    $region17: #{tpu_custom_call.1} parent=1 // pred_fallthru
      _
    // Predicated region
    $region18: #{tpu_custom_call.1} parent=1 // pred_check
      _
    $region19: #{tpu_custom_call.1} parent=1 // pred_check_branch
      %53 = sbr.rel (0) target = $region21
    $region20: #{tpu_custom_call.1} parent=1 // pred_region
      %55 = dma.done [#allocation6], 3072
    $region21: #{tpu_custom_call.1} parent=1 // pred_fallthru
      _
    // Predicated region
    $region22: #{tpu_custom_call.1} parent=1 // pred_check
      _
    $region23: #{tpu_custom_call.1} parent=1 // pred_check_branch
      %57 = sbr.rel (0) target = $region25
    $region24: #{tpu_custom_call.1} parent=1 // pred_region
      %59 = dma.done [#allocation6], 48
    $region25: #{tpu_custom_call.1} parent=1 // pred_fallthru
      _
    %v61 = vld [vmem:[#allocation2] sm:$0xff]
    %v62 = vpack.c.bf16 %v61, %v61
    %v63 = vld [vmem:[#allocation5] sm:$0xf]
    %v64 = vld [vmem:[#allocation5 + $0x4] sm:$0xf]
    %v65 = vld [vmem:[#allocation5 + $0x8] sm:$0xf]
    %v66 = vld [vmem:[#allocation5 + $0xc] sm:$0xf]
    %v67 = vld [vmem:[#allocation7] sm:$0x1]
    %v69 = vperm.slane %v67, 0
    %v75 = vunpack.c.l.b16 %v63
    %v76 = vunpack.c.l.b16 %v64
    %v77 = vunpack.c.l.b16 %v65
    %v78 = vunpack.c.l.b16 %v66
    %v79 = vpack.c.b16 %v76, %v75
    %v80 = vpack.c.b16 %v78, %v77
    %vm83 = vcmask 261120
    %v85 = vsel %vm83, %v62, 0
    %87 = vmatpush.bf16.msra.mxu0 0
    %88 = vmatpush.bf16.msra.mxu0 0
    %89 = vmatpush.bf16.msra.mxu0 0
    %90 = vmatpush.bf16.msra.mxu0 0
    %91 = vmatpush.bf16.msra.mxu0 0
    %92 = vmatpush.bf16.msra.mxu0 0
    %93 = vmatpush.bf16.msra.mxu0 %v80
    %94 = vmatpush.bf16.msra.mxu0 %v79
    %95 = vmatmul.bf16.gmra.mxu0 %v85
    %v96 = vpop.f32.mrf.mxu0
    %v97 = vadd.f32 %v69, %v96
    %v98 = vpop.f32.mrf.mxu0
    %99 = vdwg.mxu0
    %v100 = vmax.f32 %v97, 0.0
    %v101 = vpack.c.bf16 %v100, %v100
    %s102 = scalar_lea.vmem [#allocation5], 64
    %v103 = vld [vmem:[%s102] sm:$0xf]
    %v104 = vld [vmem:[%s102 + $0x4] sm:$0xf]
    %v105 = vld [vmem:[%s102 + $0x8] sm:$0xf]
    %v106 = vld [vmem:[%s102 + $0xc] sm:$0xf]
    %v107 = vld [vmem:[%s102 + $0x10] sm:$0xf]
    %v108 = vld [vmem:[%s102 + $0x14] sm:$0xf]
    %v109 = vld [vmem:[%s102 + $0x18] sm:$0xf]
    %v110 = vld [vmem:[%s102 + $0x1c] sm:$0xf]
    %v111 = vld [vmem:[%s102 + $0x20] sm:$0xf]
    %v112 = vld [vmem:[%s102 + $0x24] sm:$0xf]
    %v113 = vld [vmem:[%s102 + $0x28] sm:$0xf]
    %v114 = vld [vmem:[%s102 + $0x2c] sm:$0xf]
    %v115 = vld [vmem:[%s102 + $0x30] sm:$0xf]
    %v116 = vld [vmem:[%s102 + $0x34] sm:$0xf]
    %v117 = vld [vmem:[%s102 + $0x38] sm:$0xf]
    %v118 = vld [vmem:[%s102 + $0x3c] sm:$0xf]
    %s119 = scalar_lea.vmem [#allocation7], 1
    %v120 = vld [vmem:[%s119] sm:$0x1]
    %v122 = vperm.slane %v120, 0
    %v140 = vunpack.c.l.b16 %v103
    %v141 = vunpack.c.l.b16 %v104
    %v142 = vunpack.c.l.b16 %v105
    %v143 = vunpack.c.l.b16 %v106
    %v144 = vunpack.c.l.b16 %v107
    %v145 = vunpack.c.l.b16 %v108
    %v146 = vunpack.c.l.b16 %v109
    %v147 = vunpack.c.l.b16 %v110
    %v148 = vunpack.c.l.b16 %v111
    %v149 = vunpack.c.l.b16 %v112
    %v150 = vunpack.c.l.b16 %v113
    %v151 = vunpack.c.l.b16 %v114
    %v152 = vunpack.c.l.b16 %v115
    %v153 = vunpack.c.l.b16 %v116
    %v154 = vunpack.c.l.b16 %v117
    %v155 = vunpack.c.l.b16 %v118
    %v156 = vpack.c.b16 %v141, %v140
    %v157 = vpack.c.b16 %v143, %v142
    %v158 = vpack.c.b16 %v145, %v144
    %v159 = vpack.c.b16 %v147, %v146
    %v160 = vpack.c.b16 %v149, %v148
    %v161 = vpack.c.b16 %v151, %v150
    %v162 = vpack.c.b16 %v153, %v152
    %v163 = vpack.c.b16 %v155, %v154
    %172 = vmatpush.bf16.msra.mxu0 %v163
    %173 = vmatpush.bf16.msra.mxu0 %v162
    %174 = vmatpush.bf16.msra.mxu0 %v161
    %175 = vmatpush.bf16.msra.mxu0 %v160
    %176 = vmatpush.bf16.msra.mxu0 %v159
    %177 = vmatpush.bf16.msra.mxu0 %v158
    %178 = vmatpush.bf16.msra.mxu0 %v157
    %179 = vmatpush.bf16.msra.mxu0 %v156
    %180 = vmatmul.bf16.gmra.mxu0 %v101
    %v181 = vpop.f32.mrf.mxu0
    %v182 = vadd.f32 %v122, %v181
    %v183 = vpop.f32.mrf.mxu0
    %184 = vdwg.mxu0
    %v185 = vmax.f32 %v182, 0.0
    %v186 = vpack.c.bf16 %v185, %v185
    %s187 = scalar_lea.vmem [#allocation5], 128
    %v188 = vld [vmem:[%s187] sm:$0xf]
    %v189 = vld [vmem:[%s187 + $0x4] sm:$0xf]
    %v190 = vld [vmem:[%s187 + $0x8] sm:$0xf]
    %v191 = vld [vmem:[%s187 + $0xc] sm:$0xf]
    %v192 = vld [vmem:[%s187 + $0x10] sm:$0xf]
    %v193 = vld [vmem:[%s187 + $0x14] sm:$0xf]
    %v194 = vld [vmem:[%s187 + $0x18] sm:$0xf]
    %v195 = vld [vmem:[%s187 + $0x1c] sm:$0xf]
    %v196 = vld [vmem:[%s187 + $0x20] sm:$0xf]
    %v197 = vld [vmem:[%s187 + $0x24] sm:$0xf]
    %v198 = vld [vmem:[%s187 + $0x28] sm:$0xf]
    %v199 = vld [vmem:[%s187 + $0x2c] sm:$0xf]
    %v200 = vld [vmem:[%s187 + $0x30] sm:$0xf]
    %v201 = vld [vmem:[%s187 + $0x34] sm:$0xf]
    %v202 = vld [vmem:[%s187 + $0x38] sm:$0xf]
    %v203 = vld [vmem:[%s187 + $0x3c] sm:$0xf]
    %s204 = scalar_lea.vmem [#allocation7], 2
    %v205 = vld [vmem:[%s204] sm:$0x1]
    %v207 = vperm.slane %v205, 0
    %v225 = vunpack.c.l.b16 %v188
    %v226 = vunpack.c.l.b16 %v189
    %v227 = vunpack.c.l.b16 %v190
    %v228 = vunpack.c.l.b16 %v191
    %v229 = vunpack.c.l.b16 %v192
    %v230 = vunpack.c.l.b16 %v193
    %v231 = vunpack.c.l.b16 %v194
    %v232 = vunpack.c.l.b16 %v195
    %v233 = vunpack.c.l.b16 %v196
    %v234 = vunpack.c.l.b16 %v197
    %v235 = vunpack.c.l.b16 %v198
    %v236 = vunpack.c.l.b16 %v199
    %v237 = vunpack.c.l.b16 %v200
    %v238 = vunpack.c.l.b16 %v201
    %v239 = vunpack.c.l.b16 %v202
    %v240 = vunpack.c.l.b16 %v203
    %v241 = vpack.c.b16 %v226, %v225
    %v242 = vpack.c.b16 %v228, %v227
    %v243 = vpack.c.b16 %v230, %v229
    %v244 = vpack.c.b16 %v232, %v231
    %v245 = vpack.c.b16 %v234, %v233
    %v246 = vpack.c.b16 %v236, %v235
    %v247 = vpack.c.b16 %v238, %v237
    %v248 = vpack.c.b16 %v240, %v239
    %257 = vmatpush.bf16.msra.mxu0 %v248
    %258 = vmatpush.bf16.msra.mxu0 %v247
    %259 = vmatpush.bf16.msra.mxu0 %v246
    %260 = vmatpush.bf16.msra.mxu0 %v245
    %261 = vmatpush.bf16.msra.mxu0 %v244
    %262 = vmatpush.bf16.msra.mxu0 %v243
    %263 = vmatpush.bf16.msra.mxu0 %v242
    %264 = vmatpush.bf16.msra.mxu0 %v241
    %265 = vmatmul.bf16.gmra.mxu0 %v186
    %v266 = vpop.f32.mrf.mxu0
    %v267 = vadd.f32 %v207, %v266
    %v268 = vpop.f32.mrf.mxu0
    %269 = vdwg.mxu0
    %270 = vmax.xlane.f32.xlu0 %v267
    %v271 = vpop.xlane.xlu0 %270
    %v272 = vsub.f32 %v267, %v271
    %v273 = vmul.f32 %v272, 1.442695
    %v274 = vpow.pop %v273
    %275 = vadd.xlane.f32.xlu0 %v274
    %v276 = vpop.xlane.xlu0 %275
    %v277 = vrcp.pop %v276
    %v278 = vmul.f32 %v274, %v277
    %v279 = vpack.c.bf16 %v278, %v278
    %280 = vst [vmem:[#allocation8] sm:$0xf] %v279
    // Predicated region
    $region26: #{tpu_custom_call.1} parent=1 // pred_check
      _
    $region27: #{tpu_custom_call.1} parent=1 // pred_check_branch
      %282 = sbr.rel (0) target = $region29
    $region28: #{tpu_custom_call.1} parent=1 // pred_region
      %284 = vsyncadd [#allocation4], 0
      %s286 = sshll.u32 [#allocation8], 4
      %s287 = int_to_ptr.vmem [resolvable:$true] %s286
      %s288 = sshll.u32 %s3, 4
      %s289 = int_to_ptr.hbm [resolvable:$true] %s288
      %291 = dma.vmem_to_hbm [thread:$0]  %s287, 64, %s289, [#allocation4]
    $region29: #{tpu_custom_call.1} parent=1 // pred_fallthru
      _
    // Predicated region
    $region30: #{tpu_custom_call.1} parent=1 // pred_check
      _
    $region31: #{tpu_custom_call.1} parent=1 // pred_check_branch
      %293 = sbr.rel (0) target = $region33
    $region32: #{tpu_custom_call.1} parent=1 // pred_region
      %295 = dma.done [#allocation4], 64
    $region33: #{tpu_custom_call.1} parent=1 // pred_fallthru
      _
    %296 = vsyncpa [#allocation3], 1
    %297 = vsyncpa [#allocation6], 1
    %298 = vsyncpa [#allocation4], 1

</llo_original>
